<compile_context>
chip_gen: v6e
topology: v6e:2x2x1
jax: 0.10.0
libtpu: 0.0.40
codegen_flags: <defaults>
</compile_context>

<pallas_src>
import functools

import jax
import jax.numpy as jnp
from jax.experimental import pallas as pl
from jax.experimental.pallas import tpu as pltpu


def _round_up(x, m):
    return (x + m - 1) // m * m


# ---------------------------------------------------------------------------
# Pass 1: Conv1d (+bias) as ONE MXU matmul per batch tile, cache y, BN stats.
# ---------------------------------------------------------------------------
def _conv_bias_stats_kernel(x_ref, w_ref, b_ref, y_ref, stats_ref, slab_ref, *,
                            K, dil, pad, C_in, C_in_pad, L, L_out, mm_dtype):
    L_slab = slab_ref.shape[1]          # == L_out_pad (lane-dense, 128-mult)

    # Build the (K*C_in_pad, L_out_pad) tap slab: row block k holds the k-th
    # dilated tap of the (conceptually) zero-padded activation.  All taps fold
    # into a single MXU contraction of size K*C_in_pad instead of K tiny
    # matmuls contracting over C_in only.  Slab scratch stays f32 so all
    # boundary (masked) stores are unpacked; it is cast to the matmul dtype as
    # a value right before the dot.
    slab_ref[...] = jnp.zeros(slab_ref.shape, slab_ref.dtype)
    for k in range(K):                              # K is small & static
        src0 = max(0, k * dil - pad)
        src1 = min(L, k * dil - pad + L_slab)
        if src1 <= src0:
            continue
        j0 = src0 - (k * dil - pad)
        j1 = src1 - (k * dil - pad)
        r0 = k * C_in_pad                           # sublane-aligned (mult of 8)
        slab_ref[r0:r0 + C_in, j0:j1] = x_ref[:, src0:src1].astype(slab_ref.dtype)

    # One matmul: (C_out_pad, K*C_in_pad) x (K*C_in_pad, L_out_pad), f32 acc.
    y = jnp.dot(w_ref[...], slab_ref[...].astype(mm_dtype),
                preferred_element_type=jnp.float32)
    y = y + b_ref[...]
    y_ref[...] = y.astype(y_ref.dtype)              # lane-dense unmasked store

    # Per-tile BatchNorm partial statistics over the valid L_out columns,
    # written as (mean_tile, M2_tile) for a stable Chan combine in the glue.
    lane = jax.lax.broadcasted_iota(jnp.int32, y.shape, 1)
    valid = lane < L_out
    yv = jnp.where(valid, y, 0.0)
    mean_t = jnp.sum(yv, axis=1, keepdims=True) * (1.0 / L_out)
    dev = jnp.where(valid, y - mean_t, 0.0)
    m2_t = jnp.sum(dev * dev, axis=1, keepdims=True)
    slane = jax.lax.broadcasted_iota(jnp.int32, stats_ref.shape, 1)
    stats_ref[...] = jnp.where(slane == 0, mean_t,
                               jnp.where(slane == 1, m2_t, 0.0))


# ---------------------------------------------------------------------------
# Pass 2: element-wise folded BatchNorm affine + ReLU over the cached y.
# ---------------------------------------------------------------------------
def _bn_affine_relu_kernel(y_ref, scale_ref, shift_ref, out_ref):
    y = y_ref[...].astype(jnp.float32)
    out_ref[...] = jnp.maximum(y * scale_ref[...] + shift_ref[...],
                               0.0).astype(out_ref.dtype)


# ---------------------------------------------------------------------------
# Wrapper
# ---------------------------------------------------------------------------
def basic_conv_block(x, w, b, gamma, beta, *, ksize=7, dilation=1, stride=1,
                     eps=1e-5, compute_dtype=jnp.float32):
    """x: (N, C_in, L) float32 (PyTorch NCL). Returns (N, C_out, L_out) float32."""
    N, C_in, L = x.shape
    C_out = w.shape[0]
    assert stride == 1, "kernel written for stride=1 (module default)"
    assert w.shape == (C_out, C_in, ksize)

    # PyTorch module's padding formula (C_in term vanishes at stride=1).
    pad = int((C_in * (stride - 1) + dilation * (ksize - 1) + 1 - stride) / 2)
    L_out = L + 2 * pad - dilation * (ksize - 1)

    C_in_pad = _round_up(C_in, 8)
    C_out_pad = _round_up(C_out, 8)
    L_out_pad = _round_up(L_out, 128)               # lane-dense output blocks
    KC = ksize * C_in_pad
    itemsize = jnp.dtype(compute_dtype).itemsize

    # Weights: (C_out, C_in, K) -> (C_out_pad, K*C_in_pad), tap-major rows
    # matching the in-kernel slab layout.  Tiny -> pad/cast in the wrapper.
    wk = jnp.transpose(w, (0, 2, 1))                               # (C_out, K, C_in)
    wk = jnp.pad(wk, ((0, C_out_pad - C_out), (0, 0), (0, C_in_pad - C_in)))
    w2 = wk.reshape(C_out_pad, KC).astype(compute_dtype)
    b_col = jnp.pad(b.astype(jnp.float32),
                    (0, C_out_pad - C_out)).reshape(C_out_pad, 1)

    # Generation-aware VMEM budget (v7x: 64 MiB physical -> ~48 MiB cap;
    # v5e/v6e: 128 MiB -> ~96-100 MiB cap).
    def _vmem_budget():
        try:
            cap = int(pltpu.get_tpu_info().vmem_capacity_bytes)
        except Exception:
            cap = 64 << 20
        return min((cap * 3) // 4, 100 << 20)

    p1_blk = (C_in * L * 4 + w2.size * itemsize + C_out_pad * 4
              + C_out_pad * L_out_pad * itemsize + C_out_pad * 128 * 4)
    p2_blk = (C_out_pad * L_out_pad * itemsize + 2 * C_out_pad * 4
              + C_out_pad * L_out_pad * 4)
    slab_bytes = KC * L_out_pad * 4
    needed = 2 * max(p1_blk, p2_blk) + slab_bytes + (2 << 20)
    vmem_limit = int(min(max(needed, 16 << 20), _vmem_budget()))
    cparams = pltpu.CompilerParams(dimension_semantics=("parallel",),
                                   vmem_limit_bytes=vmem_limit)

    conv_flops = 2 * N * C_out_pad * KC * L_out_pad

    # ---- pass 1: conv(+bias) once, cache y, per-tile (mean, M2) stats -------
    y_cache, stats = pl.pallas_call(
        functools.partial(_conv_bias_stats_kernel, K=ksize, dil=dilation,
                          pad=pad, C_in=C_in, C_in_pad=C_in_pad, L=L,
                          L_out=L_out, mm_dtype=compute_dtype),
        out_shape=(jax.ShapeDtypeStruct((N, C_out_pad, L_out_pad), compute_dtype),
                   jax.ShapeDtypeStruct((N, C_out_pad, 128), jnp.float32)),
        grid=(N,),
        in_specs=[
            pl.BlockSpec((None, C_in, L), lambda n: (n, 0, 0)),
            pl.BlockSpec((C_out_pad, KC), lambda n: (0, 0)),
            pl.BlockSpec((C_out_pad, 1), lambda n: (0, 0)),
        ],
        out_specs=(
            pl.BlockSpec((None, C_out_pad, L_out_pad), lambda n: (n, 0, 0)),
            pl.BlockSpec((None, C_out_pad, 128), lambda n: (n, 0, 0)),
        ),
        scratch_shapes=[pltpu.VMEM((KC, L_out_pad), jnp.float32)],
        compiler_params=cparams,
        cost_estimate=pl.CostEstimate(
            flops=conv_flops + 5 * N * C_out_pad * L_out_pad,
            transcendentals=0,
            bytes_accessed=(x.size * 4 + w2.size * itemsize + C_out_pad * 4
                            + N * C_out_pad * L_out_pad * itemsize
                            + N * C_out_pad * 128 * 4)),
    )(x, w2, b_col)

    # ---- tiny glue: Chan-combine tile stats, fold BN into per-channel affine
    mean_t = stats[:, :C_out, 0]                     # (N, C_out) tile means
    m2_t = stats[:, :C_out, 1]                       # (N, C_out) tile M2
    mean = jnp.mean(mean_t, axis=0)                  # equal tile sizes (L_out)
    m2 = jnp.sum(m2_t, axis=0) + float(L_out) * jnp.sum(
        (mean_t - mean[None, :]) ** 2, axis=0)
    var = m2 / float(N * L_out)                      # biased, as BatchNorm uses
    inv = jax.lax.rsqrt(var + eps)
    scale = gamma.astype(jnp.float32) * inv
    shift = beta.astype(jnp.float32) - mean * scale  # conv bias already in y
    scale_col = jnp.pad(scale, (0, C_out_pad - C_out)).reshape(C_out_pad, 1)
    shift_col = jnp.pad(shift, (0, C_out_pad - C_out)).reshape(C_out_pad, 1)

    # ---- pass 2: element-wise BN affine + ReLU over cached y (no re-conv) ---
    out_full = pl.pallas_call(
        _bn_affine_relu_kernel,
        out_shape=jax.ShapeDtypeStruct((N, C_out_pad, L_out_pad), jnp.float32),
        grid=(N,),
        in_specs=[
            pl.BlockSpec((None, C_out_pad, L_out_pad), lambda n: (n, 0, 0)),
            pl.BlockSpec((C_out_pad, 1), lambda n: (0, 0)),
            pl.BlockSpec((C_out_pad, 1), lambda n: (0, 0)),
        ],
        out_specs=pl.BlockSpec((None, C_out_pad, L_out_pad), lambda n: (n, 0, 0)),
        compiler_params=cparams,
        cost_estimate=pl.CostEstimate(
            flops=3 * N * C_out_pad * L_out_pad,
            transcendentals=0,
            bytes_accessed=(N * C_out_pad * L_out_pad * itemsize
                            + 2 * C_out_pad * 4
                            + N * C_out_pad * L_out_pad * 4)),
    )(y_cache, scale_col, shift_col)

    # Slice off the lane/sublane padding (identity when already aligned).
    return out_full[:, :C_out, :L_out]


# ---------------------------------------------------------------------------
# Pure-JAX reference (Conv1d + training-mode BatchNorm1d + ReLU)
# ---------------------------------------------------------------------------
def reference(x, w, b, gamma, beta, *, ksize=7, eps=1e-5):
    pad = (ksize - 1) // 2
    y = jax.lax.conv_general_dilated(
        x, w, window_strides=(1,), padding=[(pad, pad)],
        dimension_numbers=("NCH", "OIH", "NCH"))
    y = y + b[None, :, None]
    mean = jnp.mean(y, axis=(0, 2), keepdims=True)
    var = jnp.mean((y - mean) ** 2, axis=(0, 2), keepdims=True)
    yhat = (y - mean) * jax.lax.rsqrt(var + eps)
    yhat = yhat * gamma[None, :, None] + beta[None, :, None]
    return jnp.maximum(yhat, 0.0)


if __name__ == "__main__":
    # Small shapes consistent with the module: N=2, C_in=4, L=16, C_out=8, K=7.
    N, C_in, L, C_out, K = 2, 4, 16, 8, 7

    key = jax.random.PRNGKey(0)
    kx, kw, kb, kg, kbt = jax.random.split(key, 5)

    x = jax.random.normal(kx, (N, C_in, L), dtype=jnp.float32)
    fan_in = C_in * K
    w = jax.random.normal(kw, (C_out, C_in, K), dtype=jnp.float32) / jnp.sqrt(fan_in)
    b = jax.random.normal(kb, (C_out,), dtype=jnp.float32) / jnp.sqrt(fan_in)
    gamma = 1.0 + 0.1 * jax.random.normal(kg, (C_out,), dtype=jnp.float32)
    beta = 0.1 * jax.random.normal(kbt, (C_out,), dtype=jnp.float32)

    ref = reference(x, w, b, gamma, beta, ksize=K)

    # Exact f32 path.
    out = basic_conv_block(x, w, b, gamma, beta, ksize=K)
    out = jax.block_until_ready(out)
    assert out.shape == (N, C_out, L)
    assert jnp.allclose(out, ref, atol=1e-4, rtol=1e-4), \
        f"f32 max abs diff {jnp.max(jnp.abs(out - ref))}"

    # bf16 matmul/cache path (halves y-cache HBM bytes, 2x MXU rate on
    # v6e/v7x); accumulation + stats + BN/ReLU epilogue stay f32.
    out_bf16 = basic_conv_block(x, w, b, gamma, beta, ksize=K,
                                compute_dtype=jnp.bfloat16)
    out_bf16 = jax.block_until_ready(out_bf16)
    assert out_bf16.shape == (N, C_out, L)
    assert jnp.allclose(out_bf16, ref, atol=1e-1, rtol=1e-1), \
        f"bf16 max abs diff {jnp.max(jnp.abs(out_bf16 - ref))}"

    print("KERNEL_OK")
</pallas_src>

<mosaic_0001>
module attributes {stable_mosaic.version = 11 : i64} {
  func.func @_conv_bias_stats_kernel(%arg0: i32, %arg1: memref<1x4x16xf32, #tpu.memory_space<vmem>>, %arg2: memref<8x56xf32, #tpu.memory_space<vmem>>, %arg3: memref<8x1xf32, #tpu.memory_space<vmem>>, %arg4: memref<1x8x128xf32, #tpu.memory_space<vmem>>, %arg5: memref<1x8x128xf32, #tpu.memory_space<vmem>>, %arg6: memref<56x128xf32, #tpu.memory_space<vmem>>) attributes {dimension_semantics = [#tpu.dimension_semantics<parallel>], iteration_bounds = array<i64: 2>, scalar_prefetch = 0 : i64, scratch_operands = 1 : i64, tpu.core_type = #tpu.core_type<tc>, window_params = [{transform_indices = @transform_0, window_bounds = array<i64: 1, 4, 16>}, {pipeline_mode = #tpu.pipeline_mode<synchronous>, transform_indices = @transform_1, window_bounds = array<i64: 8, 56>}, {pipeline_mode = #tpu.pipeline_mode<synchronous>, transform_indices = @transform_2, window_bounds = array<i64: 8, 1>}, {transform_indices = @transform_3, window_bounds = array<i64: 1, 8, 128>}, {transform_indices = @transform_4, window_bounds = array<i64: 1, 8, 128>}]} {
    %cst = arith.constant 0.000000e+00 : f32
    %0 = vector.broadcast %cst : f32 to vector<56x128xf32>
    %c0 = arith.constant 0 : index
    %c0_0 = arith.constant 0 : index
    %1 = vector.load %arg6[%c0, %c0_0] : memref<56x128xf32, #tpu.memory_space<vmem>>, vector<56x128xf32>
    tpu.vector_store %arg6[%c0, %c0_0], %0 {strides = array<i32>} : memref<56x128xf32, #tpu.memory_space<vmem>>, vector<56x128xf32>,
    %c0_1 = arith.constant 0 : index
    %c0_2 = arith.constant 0 : index
    %c0_3 = arith.constant 0 : index
    %2 = vector.load %arg1[%c0_1, %c0_2, %c0_3] : memref<1x4x16xf32, #tpu.memory_space<vmem>>, vector<1x4x16xf32>
    %3 = vector.shape_cast %2 : vector<1x4x16xf32> to vector<4x16xf32>
    %c0_4 = arith.constant 0 : index
    %c3 = arith.constant 3 : index
    %4 = vector.load %arg6[%c0_4, %c3] : memref<56x128xf32, #tpu.memory_space<vmem>>, vector<4x16xf32>
    tpu.vector_store %arg6[%c0_4, %c3], %3 {strides = array<i32>} : memref<56x128xf32, #tpu.memory_space<vmem>>, vector<4x16xf32>,
    %c0_5 = arith.constant 0 : index
    %c0_6 = arith.constant 0 : index
    %c0_7 = arith.constant 0 : index
    %5 = vector.load %arg1[%c0_5, %c0_6, %c0_7] : memref<1x4x16xf32, #tpu.memory_space<vmem>>, vector<1x4x16xf32>
    %6 = vector.shape_cast %5 : vector<1x4x16xf32> to vector<4x16xf32>
    %c8 = arith.constant 8 : index
    %c2 = arith.constant 2 : index
    %7 = vector.load %arg6[%c8, %c2] : memref<56x128xf32, #tpu.memory_space<vmem>>, vector<4x16xf32>
    tpu.vector_store %arg6[%c8, %c2], %6 {strides = array<i32>} : memref<56x128xf32, #tpu.memory_space<vmem>>, vector<4x16xf32>,
    %c0_8 = arith.constant 0 : index
    %c0_9 = arith.constant 0 : index
    %c0_10 = arith.constant 0 : index
    %8 = vector.load %arg1[%c0_8, %c0_9, %c0_10] : memref<1x4x16xf32, #tpu.memory_space<vmem>>, vector<1x4x16xf32>
    %9 = vector.shape_cast %8 : vector<1x4x16xf32> to vector<4x16xf32>
    %c16 = arith.constant 16 : index
    %c1 = arith.constant 1 : index
    %10 = vector.load %arg6[%c16, %c1] : memref<56x128xf32, #tpu.memory_space<vmem>>, vector<4x16xf32>
    tpu.vector_store %arg6[%c16, %c1], %9 {strides = array<i32>} : memref<56x128xf32, #tpu.memory_space<vmem>>, vector<4x16xf32>,
    %c0_11 = arith.constant 0 : index
    %c0_12 = arith.constant 0 : index
    %c0_13 = arith.constant 0 : index
    %11 = vector.load %arg1[%c0_11, %c0_12, %c0_13] : memref<1x4x16xf32, #tpu.memory_space<vmem>>, vector<1x4x16xf32>
    %12 = vector.shape_cast %11 : vector<1x4x16xf32> to vector<4x16xf32>
    %c24 = arith.constant 24 : index
    %c0_14 = arith.constant 0 : index
    %13 = vector.load %arg6[%c24, %c0_14] : memref<56x128xf32, #tpu.memory_space<vmem>>, vector<4x16xf32>
    tpu.vector_store %arg6[%c24, %c0_14], %12 {strides = array<i32>} : memref<56x128xf32, #tpu.memory_space<vmem>>, vector<4x16xf32>,
    %c0_15 = arith.constant 0 : index
    %c0_16 = arith.constant 0 : index
    %c1_17 = arith.constant 1 : index
    %14 = vector.load %arg1[%c0_15, %c0_16, %c1_17] : memref<1x4x16xf32, #tpu.memory_space<vmem>>, vector<1x4x15xf32>
    %15 = vector.shape_cast %14 : vector<1x4x15xf32> to vector<4x15xf32>
    %c32 = arith.constant 32 : index
    %c0_18 = arith.constant 0 : index
    %16 = vector.load %arg6[%c32, %c0_18] : memref<56x128xf32, #tpu.memory_space<vmem>>, vector<4x15xf32>
    tpu.vector_store %arg6[%c32, %c0_18], %15 {strides = array<i32>} : memref<56x128xf32, #tpu.memory_space<vmem>>, vector<4x15xf32>,
    %c0_19 = arith.constant 0 : index
    %c0_20 = arith.constant 0 : index
    %c2_21 = arith.constant 2 : index
    %17 = vector.load %arg1[%c0_19, %c0_20, %c2_21] : memref<1x4x16xf32, #tpu.memory_space<vmem>>, vector<1x4x14xf32>
    %18 = vector.shape_cast %17 : vector<1x4x14xf32> to vector<4x14xf32>
    %c40 = arith.constant 40 : index
    %c0_22 = arith.constant 0 : index
    %19 = vector.load %arg6[%c40, %c0_22] : memref<56x128xf32, #tpu.memory_space<vmem>>, vector<4x14xf32>
    tpu.vector_store %arg6[%c40, %c0_22], %18 {strides = array<i32>} : memref<56x128xf32, #tpu.memory_space<vmem>>, vector<4x14xf32>,
    %c0_23 = arith.constant 0 : index
    %c0_24 = arith.constant 0 : index
    %c3_25 = arith.constant 3 : index
    %20 = vector.load %arg1[%c0_23, %c0_24, %c3_25] : memref<1x4x16xf32, #tpu.memory_space<vmem>>, vector<1x4x13xf32>
    %21 = vector.shape_cast %20 : vector<1x4x13xf32> to vector<4x13xf32>
    %c48 = arith.constant 48 : index
    %c0_26 = arith.constant 0 : index
    %22 = vector.load %arg6[%c48, %c0_26] : memref<56x128xf32, #tpu.memory_space<vmem>>, vector<4x13xf32>
    tpu.vector_store %arg6[%c48, %c0_26], %21 {strides = array<i32>} : memref<56x128xf32, #tpu.memory_space<vmem>>, vector<4x13xf32>,
    %c0_27 = arith.constant 0 : index
    %c0_28 = arith.constant 0 : index
    %23 = vector.load %arg2[%c0_27, %c0_28] : memref<8x56xf32, #tpu.memory_space<vmem>>, vector<8x56xf32>
    %c0_29 = arith.constant 0 : index
    %c0_30 = arith.constant 0 : index
    %24 = vector.load %arg6[%c0_29, %c0_30] : memref<56x128xf32, #tpu.memory_space<vmem>>, vector<56x128xf32>
    %cst_31 = arith.constant dense<0.000000e+00> : vector<8x128xf32>
    %25 = tpu.matmul %23, %24, %cst_31 {dimension_numbers = #tpu.dot_dimension_numbers<[1], [0], [0], [1], [0, 0, 1, 1], [], []>} : vector<8x56xf32>, vector<56x128xf32>, vector<8x128xf32> -> vector<8x128xf32>
    %c0_32 = arith.constant 0 : index
    %c0_33 = arith.constant 0 : index
    %26 = vector.load %arg3[%c0_32, %c0_33] : memref<8x1xf32, #tpu.memory_space<vmem>>, vector<8x1xf32>
    %27 = vector.broadcast %26 : vector<8x1xf32> to vector<8x128xf32>
    %28 = arith.addf %25, %27 : vector<8x128xf32>
    %c0_34 = arith.constant 0 : index
    %c0_35 = arith.constant 0 : index
    %c0_36 = arith.constant 0 : index
    %29 = vector.load %arg4[%c0_34, %c0_35, %c0_36] : memref<1x8x128xf32, #tpu.memory_space<vmem>>, vector<1x8x128xf32>
    %30 = vector.shape_cast %29 : vector<1x8x128xf32> to vector<8x128xf32>
    %31 = vector.shape_cast %28 : vector<8x128xf32> to vector<1x8x128xf32>
    tpu.vector_store %arg4[%c0_34, %c0_35, %c0_36], %31 {strides = array<i32>} : memref<1x8x128xf32, #tpu.memory_space<vmem>>, vector<1x8x128xf32>,
    %32 = tpu.iota {dimensions = array<i32: 1>} : vector<8x128xi32>
    %c16_i32 = arith.constant 16 : i32
    %33 = vector.broadcast %c16_i32 : i32 to vector<8x128xi32>
    %34 = arith.cmpi slt, %32, %33 : vector<8x128xi32>
    %cst_37 = arith.constant 0.000000e+00 : f32
    %35 = vector.broadcast %cst_37 : f32 to vector<8x128xf32>
    %36 = arith.select %34, %28, %35 : vector<8x128xi1>, vector<8x128xf32>
    %cst_38 = arith.constant dense<0.000000e+00> : vector<8xf32>
    %37 = vector.multi_reduction <add>, %36, %cst_38 [1] : vector<8x128xf32> to vector<8xf32>
    %38 = vector.shape_cast %37 : vector<8xf32> to vector<8x1xf32>
    %cst_39 = arith.constant 6.250000e-02 : f32
    %39 = vector.broadcast %cst_39 : f32 to vector<8x1xf32>
    %40 = arith.mulf %38, %39 : vector<8x1xf32>
    %41 = vector.broadcast %40 : vector<8x1xf32> to vector<8x128xf32>
    %42 = arith.subf %28, %41 : vector<8x128xf32>
    %cst_40 = arith.constant 0.000000e+00 : f32
    %43 = vector.broadcast %cst_40 : f32 to vector<8x128xf32>
    %44 = arith.select %34, %42, %43 : vector<8x128xi1>, vector<8x128xf32>
    %45 = arith.mulf %44, %44 : vector<8x128xf32>
    %cst_41 = arith.constant dense<0.000000e+00> : vector<8xf32>
    %46 = vector.multi_reduction <add>, %45, %cst_41 [1] : vector<8x128xf32> to vector<8xf32>
    %47 = vector.shape_cast %46 : vector<8xf32> to vector<8x1xf32>
    %48 = tpu.iota {dimensions = array<i32: 1>} : vector<8x128xi32>
    %c0_i32 = arith.constant 0 : i32
    %49 = vector.broadcast %c0_i32 : i32 to vector<8x128xi32>
    %50 = arith.cmpi eq, %48, %49 : vector<8x128xi32>
    %c1_i32 = arith.constant 1 : i32
    %51 = vector.broadcast %c1_i32 : i32 to vector<8x128xi32>
    %52 = arith.cmpi eq, %48, %51 : vector<8x128xi32>
    %cst_42 = arith.constant 0.000000e+00 : f32
    %53 = vector.shape_cast %47 : vector<8x1xf32> to vector<8x1xf32>
    %54 = vector.broadcast %53 : vector<8x1xf32> to vector<8x128xf32>
    %55 = vector.broadcast %cst_42 : f32 to vector<8x128xf32>
    %56 = arith.select %52, %54, %55 : vector<8x128xi1>, vector<8x128xf32>
    %57 = vector.shape_cast %40 : vector<8x1xf32> to vector<8x1xf32>
    %58 = vector.broadcast %57 : vector<8x1xf32> to vector<8x128xf32>
    %59 = arith.select %50, %58, %56 : vector<8x128xi1>, vector<8x128xf32>
    %c0_43 = arith.constant 0 : index
    %c0_44 = arith.constant 0 : index
    %c0_45 = arith.constant 0 : index
    %60 = vector.load %arg5[%c0_43, %c0_44, %c0_45] : memref<1x8x128xf32, #tpu.memory_space<vmem>>, vector<1x8x128xf32>
    %61 = vector.shape_cast %60 : vector<1x8x128xf32> to vector<8x128xf32>
    %62 = vector.shape_cast %59 : vector<8x128xf32> to vector<1x8x128xf32>
    tpu.vector_store %arg5[%c0_43, %c0_44, %c0_45], %62 {strides = array<i32>} : memref<1x8x128xf32, #tpu.memory_space<vmem>>, vector<1x8x128xf32>,
    return
  }
  func.func @transform_0(%arg0: i32) -> (i32, i32, i32) {
    %c0_i32 = arith.constant 0 : i32
    %c0_i32_0 = arith.constant 0 : i32
    %c0_i32_1 = arith.constant 0 : i32
    return %arg0, %c0_i32, %c0_i32_0 : i32, i32, i32
  }
  func.func @transform_1(%arg0: i32) -> (i32, i32) {
    %c0_i32 = arith.constant 0 : i32
    %c0_i32_0 = arith.constant 0 : i32
    %c0_i32_1 = arith.constant 0 : i32
    return %c0_i32, %c0_i32_0 : i32, i32
  }
  func.func @transform_2(%arg0: i32) -> (i32, i32) {
    %c0_i32 = arith.constant 0 : i32
    %c0_i32_0 = arith.constant 0 : i32
    %c0_i32_1 = arith.constant 0 : i32
    return %c0_i32, %c0_i32_0 : i32, i32
  }
  func.func @transform_3(%arg0: i32) -> (i32, i32, i32) {
    %c0_i32 = arith.constant 0 : i32
    %c0_i32_0 = arith.constant 0 : i32
    %c0_i32_1 = arith.constant 0 : i32
    return %arg0, %c0_i32, %c0_i32_0 : i32, i32, i32
  }
  func.func @transform_4(%arg0: i32) -> (i32, i32, i32) {
    %c0_i32 = arith.constant 0 : i32
    %c0_i32_0 = arith.constant 0 : i32
    %c0_i32_1 = arith.constant 0 : i32
    return %arg0, %c0_i32, %c0_i32_0 : i32, i32, i32
  }
}

</mosaic_0001>

<llo_original>
// kernel: tpu_custom_call.1
$region0: #{tpu_custom_call.1}
  #allocation0 [shape = 'u32[]', space=smem, size = 0x4, offset = 0x4, fixed_abs, tag = 'smem constant byte address 0x4 - core index']
  #allocation1 [shape = 'u32[144,128]{1,0:T(1,128)}', space=vmem, size = 0x12000, scoped, tag = 'internal scratch']
  #allocation2 [shape = 'f32[56,128]{1,0:T(8,128)}', space=vmem, size = 0x7000, scoped, tag = 'scratch operand']
  %s0 = inlined_call_operand.vmem [shape: f32[2,4,16], index: 0, kind: input, shape index: {}]
  %s1 = inlined_call_operand.hbm [shape: f32[8,56], index: 1, kind: input, shape index: {}]
  %s2 = inlined_call_operand.vmem [shape: f32[8,1], index: 2, kind: input, shape index: {}]
  %s3 = inlined_call_operand.hbm [shape: f32[2,8,128], index: 3, kind: output, shape index: {0}]
  %s4 = inlined_call_operand.hbm [shape: f32[2,8,128], index: 4, kind: output, shape index: {1}]
  %5 = xla_tuple %s3, %s4
  %s6 = sld [smem:[#allocation0]]
  $region57: #{tpu_custom_call.1} parent=0
    _
  %s8 = ssub.s32 1, %s6
  %s9 = scalar_select 0, %s8, %s6
  $region1: #{tpu_custom_call.1} parent=0
    #allocation3 [shape = 'u8[4096]{0}', space=vmem, size = 0x1000, scoped, tag = 'input window, operand 1, single buffered']
    #allocation4 [shape = 's32[2]{0}', space=sflag, size = 0x8, scoped, tag = 'scoped memory for tpu_custom_call.1']
    #allocation5 [shape = 's32[2]{0}', space=sflag, size = 0x8, scoped, tag = 'scoped memory for tpu_custom_call.1']
    #allocation6 [shape = 'u8[8192]{0}', space=vmem, size = 0x2000, scoped, tag = 'output window, operand 0']
    #allocation7 [shape = 'u8[8192]{0}', space=vmem, size = 0x2000, scoped, tag = 'output window, operand 1']
    #allocation8 [shape = 's32[2]{0}', space=sflag, size = 0x8, scoped, tag = 'scoped memory for tpu_custom_call.1']
    %10 = vsyncpa [#allocation4], 0
    %11 = vsyncpa [#allocation5], 0
    %s12 = scalar_lea.sflag [#allocation5], 1
    %13 = vsyncpa %s12, 0
    %14 = vsyncpa [#allocation8], 0
    %s15 = scalar_lea.sflag [#allocation8], 1
    %16 = vsyncpa %s15, 0
    loop: start=0, step=1, limit=4
    $region2: #{tpu_custom_call.1} parent=1 // loop_pre_header
      _
    $region3: #{tpu_custom_call.1} parent=1 // loop_header
      %s18 = sphi 0, %s22
      %p19 = scmp.ge.s32.totalorder %s18, 4
      %s28 = sphi 0, %s30
      %s31 = sphi 0, %s28
      %s32 = sphi 0, %s31
      %s48 = sphi 0, %s32
      %s52 = sphi 0, %s52
      %s54 = sphi 0, %s52
      %s55 = sphi 0, %s54
      %s69 = sphi 0, %s55
      %s73 = sphi 0, %s73
      %s75 = sphi 0, %s73
      %s76 = sphi 0, %s75
      %s90 = sphi 0, %s76
      %s96 = sphi 0, %s98
      %s99 = sphi 0, %s96
      %s100 = sphi 0, %s99
      %s116 = sphi 0, %s100
      %s122 = sphi 0, %s124
      %s125 = sphi 0, %s122
      %s126 = sphi 0, %s125
      %s142 = sphi 0, %s126
    $region4: #{tpu_custom_call.1} parent=1 // loop_header_branch
      %21 = sbr.rel (%p19) target = $region8
    $region5: #{tpu_custom_call.1} parent=1 // loop_body
      %s23 = ssub.s32 %s18, 1
      %s24 = ssub.s32 %s18, 2
      %s25 = sadd.s32 %s18, 1
      %s26 = ssub.s32 %s18, %s25
      %p27 = scmp.eq.s32.totalorder %s26, 0
      %s29 = sadd.s32 %s28, 1
      %s30 = scalar_select %p27, %s28, %s29
      %p33 = pneg %p27
      %p34 = scmp.eq.s32.totalorder %s18, 1
      %p35 = por %p33, %p34
      %p36 = scmp.ne.s32.totalorder %s28, %s31
      %p37 = scmp.eq.s32.totalorder %s18, 0
      %p38 = por %p36, %p37
      %p39 = scmp.ne.s32.totalorder %s28, %s31
      %p40 = scmp.eq.s32.totalorder %s23, 1
      %p41 = por %p39, %p40
      %p42 = scmp.ne.s32.totalorder %s31, %s32
      %p43 = scmp.eq.s32.totalorder %s23, 0
      %p44 = por %p42, %p43
      %p45 = scmp.ne.s32.totalorder %s31, %s32
      %p46 = scmp.eq.s32.totalorder %s24, 1
      %p47 = por %p45, %p46
      %p49 = scmp.ne.s32.totalorder %s32, %s48
      %p50 = scmp.eq.s32.totalorder %s24, 0
      %p51 = por %p49, %p50
      %s53 = sadd.s32 %s52, 1
      %p56 = scmp.eq.s32.totalorder %s18, 1
      %p57 = scmp.ne.s32.totalorder %s52, %s54
      %p58 = scmp.eq.s32.totalorder %s18, 0
      %p59 = por %p57, %p58
      %p60 = scmp.ne.s32.totalorder %s52, %s54
      %p61 = scmp.eq.s32.totalorder %s23, 1
      %p62 = por %p60, %p61
      %p63 = scmp.ne.s32.totalorder %s54, %s55
      %p64 = scmp.eq.s32.totalorder %s23, 0
      %p65 = por %p63, %p64
      %p66 = scmp.ne.s32.totalorder %s54, %s55
      %p67 = scmp.eq.s32.totalorder %s24, 1
      %p68 = por %p66, %p67
      %p70 = scmp.ne.s32.totalorder %s55, %s69
      %p71 = scmp.eq.s32.totalorder %s24, 0
      %p72 = por %p70, %p71
      %s74 = sadd.s32 %s73, 1
      %p77 = scmp.eq.s32.totalorder %s18, 1
      %p78 = scmp.ne.s32.totalorder %s73, %s75
      %p79 = scmp.eq.s32.totalorder %s18, 0
      %p80 = por %p78, %p79
      %p81 = scmp.ne.s32.totalorder %s73, %s75
      %p82 = scmp.eq.s32.totalorder %s23, 1
      %p83 = por %p81, %p82
      %p84 = scmp.ne.s32.totalorder %s75, %s76
      %p85 = scmp.eq.s32.totalorder %s23, 0
      %p86 = por %p84, %p85
      %p87 = scmp.ne.s32.totalorder %s75, %s76
      %p88 = scmp.eq.s32.totalorder %s24, 1
      %p89 = por %p87, %p88
      %p91 = scmp.ne.s32.totalorder %s76, %s90
      %p92 = scmp.eq.s32.totalorder %s24, 0
      %p93 = por %p91, %p92
      %s94 = ssub.s32 %s18, %s25
      %p95 = scmp.eq.s32.totalorder %s94, 0
      %s97 = sadd.s32 %s96, 1
      %s98 = scalar_select %p95, %s96, %s97
      %p101 = pneg %p95
      %p102 = scmp.eq.s32.totalorder %s18, 1
      %p103 = por %p101, %p102
      %p104 = scmp.ne.s32.totalorder %s96, %s99
      %p105 = scmp.eq.s32.totalorder %s18, 0
      %p106 = por %p104, %p105
      %p107 = scmp.ne.s32.totalorder %s96, %s99
      %p108 = scmp.eq.s32.totalorder %s23, 1
      %p109 = por %p107, %p108
      %p110 = scmp.ne.s32.totalorder %s99, %s100
      %p111 = scmp.eq.s32.totalorder %s23, 0
      %p112 = por %p110, %p111
      %p113 = scmp.ne.s32.totalorder %s99, %s100
      %p114 = scmp.eq.s32.totalorder %s24, 1
      %p115 = por %p113, %p114
      %p117 = scmp.ne.s32.totalorder %s100, %s116
      %p118 = scmp.eq.s32.totalorder %s24, 0
      %p119 = por %p117, %p118
      %s120 = ssub.s32 %s18, %s25
      %p121 = scmp.eq.s32.totalorder %s120, 0
      %s123 = sadd.s32 %s122, 1
      %s124 = scalar_select %p121, %s122, %s123
      %p127 = pneg %p121
      %p128 = scmp.eq.s32.totalorder %s18, 1
      %p129 = por %p127, %p128
      %p130 = scmp.ne.s32.totalorder %s122, %s125
      %p131 = scmp.eq.s32.totalorder %s18, 0
      %p132 = por %p130, %p131
      %p133 = scmp.ne.s32.totalorder %s122, %s125
      %p134 = scmp.eq.s32.totalorder %s23, 1
      %p135 = por %p133, %p134
      %p136 = scmp.ne.s32.totalorder %s125, %s126
      %p137 = scmp.eq.s32.totalorder %s23, 0
      %p138 = por %p136, %p137
      %p139 = scmp.ne.s32.totalorder %s125, %s126
      %p140 = scmp.eq.s32.totalorder %s24, 1
      %p141 = por %p139, %p140
      %p143 = scmp.ne.s32.totalorder %s126, %s142
      %p144 = scmp.eq.s32.totalorder %s24, 0
      %p145 = por %p143, %p144
      %p146 = scmp.le.s32.totalorder 1, %s18
      %p147 = scmp.lt.s32.totalorder %s18, 3
      %p148 = pnand %p146, %p147
      %p149 = pneg %p148
      // Predicated region
      $region9: #{tpu_custom_call.1} parent=5 // pred_check
        _
      $region10: #{tpu_custom_call.1} parent=5 // pred_check_branch
        %151 = sbr.rel (%p148) target = $region12
      $region11: #{tpu_custom_call.1} parent=5 // pred_region
        %s152 = ssub.s32 %s18, 1
        // Predicated region
        $region13: #{tpu_custom_call.1} parent=11 // pred_check
          %p153 = pneg %p65
        $region14: #{tpu_custom_call.1} parent=11 // pred_check_branch
          %155 = sbr.rel (%p153) target = $region16
        $region15: #{tpu_custom_call.1} parent=11 // pred_region
          %s157 = ssub.s32 128, 128
          %158 = vsyncadd [#allocation4], %s157
          %s160 = sshll.u32 [#allocation3], 4
          %s161 = int_to_ptr.vmem [resolvable:$true] %s160
          %163 = dma.hbm_to_vmem [thread:$0]  %s1, 128, %s161, [#allocation4]
        $region16: #{tpu_custom_call.1} parent=11 // pred_fallthru
          _
        // Predicated region
        $region17: #{tpu_custom_call.1} parent=11 // pred_check
          %p164 = pneg %p86
        $region18: #{tpu_custom_call.1} parent=11 // pred_check_branch
          %166 = sbr.rel (%p164) target = $region20
        $region19: #{tpu_custom_call.1} parent=11 // pred_region
          _
        $region20: #{tpu_custom_call.1} parent=11 // pred_fallthru
          _
      $region12: #{tpu_custom_call.1} parent=5 // pred_fallthru
        _
      %p167 = scmp.lt.s32.totalorder %s18, 2
      // Predicated region
      $region21: #{tpu_custom_call.1} parent=5 // pred_check
        %p168 = pneg %p167
      $region22: #{tpu_custom_call.1} parent=5 // pred_check_branch
        %170 = sbr.rel (%p168) target = $region24
      $region23: #{tpu_custom_call.1} parent=5 // pred_region
        // Predicated region
        $region25: #{tpu_custom_call.1} parent=23 // pred_check
          %p171 = pneg %p38
        $region26: #{tpu_custom_call.1} parent=23 // pred_check_branch
          %173 = sbr.rel (%p171) target = $region28
        $region27: #{tpu_custom_call.1} parent=23 // pred_region
          %p174 = scmp.lt.s32.totalorder %s18, 1
          %s175 = scalar_select %p174, %s18, 1
          %s176 = smul.addr %s175, 4
          %s177 = scalar_lea.vmem %s0, %s176
        $region28: #{tpu_custom_call.1} parent=23 // pred_fallthru
          _
      $region24: #{tpu_custom_call.1} parent=5 // pred_fallthru
        _
      %p178 = scmp.le.s32.totalorder 1, %s18
      %p179 = scmp.lt.s32.totalorder %s18, 3
      %p180 = pnand %p178, %p179
      %p181 = pneg %p180
      // Predicated region
      $region29: #{tpu_custom_call.1} parent=5 // pred_check
        _
      $region30: #{tpu_custom_call.1} parent=5 // pred_check_branch
        %183 = sbr.rel (%p180) target = $region32
      $region31: #{tpu_custom_call.1} parent=5 // pred_region
        %s184 = ssub.s32 %s18, 1
        // Predicated region
        $region33: #{tpu_custom_call.1} parent=31 // pred_check
          %p185 = pneg %p65
        $region34: #{tpu_custom_call.1} parent=31 // pred_check_branch
          %187 = sbr.rel (%p185) target = $region36
        $region35: #{tpu_custom_call.1} parent=31 // pred_region
          %188 = dma.done [#allocation4], 128
        $region36: #{tpu_custom_call.1} parent=31 // pred_fallthru
          _
        %p189 = scmp.lt.s32.totalorder %s23, 1
        %s190 = scalar_select %p189, %s23, 1
        %s191 = smul.addr %s190, 4
        %s192 = scalar_lea.vmem %s0, %s191
        %p193 = pneg %p44
        %p194 = pneg %p41
        %p195 = pneg %p65
        %p196 = pneg %p62
        %p197 = pneg %p86
        %p198 = pneg %p83
        %p199 = pneg %p112
        %p200 = pneg %p109
        %s201 = sand.u32 %s99, 1
        %s202 = scalar_lea.sflag [#allocation5], %s201
        %s203 = sand.u32 %s99, 1
        %s204 = smul.addr %s203, 8
        %s205 = scalar_lea.vmem [#allocation6], %s204
        %p206 = pneg %p138
        %p207 = pneg %p135
        %s208 = sand.u32 %s125, 1
        %s209 = scalar_lea.sflag [#allocation8], %s208
        %s210 = sand.u32 %s125, 1
        %s211 = smul.addr %s210, 8
        %s212 = scalar_lea.vmem [#allocation7], %s211
        %p213 = scmp.lt.s32.totalorder %s23, 1
        %s214 = scalar_select %p213, %s23, 1
        %s215 = smul.addr %s214, 4
        %s216 = scalar_lea.vmem %s0, %s215
        %217 = vst [vmem:[#allocation2] sm:$0xff] 0.0
        %218 = vst [vmem:[#allocation2 + $0x8] sm:$0xff] 0.0
        %219 = vst [vmem:[#allocation2 + $0x10] sm:$0xff] 0.0
        %220 = vst [vmem:[#allocation2 + $0x18] sm:$0xff] 0.0
        %221 = vst [vmem:[#allocation2 + $0x20] sm:$0xff] 0.0
        %222 = vst [vmem:[#allocation2 + $0x28] sm:$0xff] 0.0
        %223 = vst [vmem:[#allocation2 + $0x30] sm:$0xff] 0.0
        %v224 = vld [vmem:[%s216] sm:$0xf]
        %226 = vrot.lane.b32.xlu0 %v224, 3
        %v227 = vpop.permute.xlu0 %226
        %vm229 = vcmask 150552
        %230 = vst.msk [vmem:[#allocation2] sm:$0xf] %vm229, %v227
        %v231 = vld [vmem:[%s216] sm:$0xf]
        %233 = vrot.lane.b32.xlu0 %v231, 2
        %v234 = vpop.permute.xlu0 %233
        %vm236 = vcmask 142352
        %237 = vst.msk [vmem:[#allocation2 + $0x8] sm:$0xf] %vm236, %v234
        %v238 = vld [vmem:[%s216] sm:$0xf]
        %240 = vrot.lane.b32.xlu0 %v238, 1
        %v241 = vpop.permute.xlu0 %240
        %vm243 = vcmask 134152
        %244 = vst.msk [vmem:[#allocation2 + $0x10] sm:$0xf] %vm243, %v241
        %v245 = vld [vmem:[%s216] sm:$0xf]
        %vm246 = vcmask 125952
        %247 = vst.msk [vmem:[#allocation2 + $0x18] sm:$0xf] %vm246, %v245
        %v248 = vld [vmem:[%s216] sm:$0xf]
        %250 = vrot.lane.b32.xlu0 %v248, 127
        %v251 = vpop.permute.xlu0 %250
        %vm253 = vcmask 117760
        %254 = vst.msk [vmem:[#allocation2 + $0x20] sm:$0xf] %vm253, %v251
        %v255 = vld [vmem:[%s216] sm:$0xf]
        %257 = vrot.lane.b32.xlu0 %v255, 126
        %v258 = vpop.permute.xlu0 %257
        %vm260 = vcmask 109568
        %261 = vst.msk [vmem:[#allocation2 + $0x28] sm:$0xf] %vm260, %v258
        %v262 = vld [vmem:[%s216] sm:$0xf]
        %264 = vrot.lane.b32.xlu0 %v262, 125
        %v265 = vpop.permute.xlu0 %264
        %vm267 = vcmask 101376
        %268 = vst.msk [vmem:[#allocation2 + $0x30] sm:$0xf] %vm267, %v265
        %v269 = vld [vmem:[#allocation3] sm:$0xff]
        %v270 = vld [vmem:[#allocation2] sm:$0xff]
        %v271 = vld [vmem:[#allocation2 + $0x8] sm:$0xff]
        %v272 = vld [vmem:[#allocation2 + $0x10] sm:$0xff]
        %v273 = vld [vmem:[#allocation2 + $0x18] sm:$0xff]
        %v274 = vld [vmem:[#allocation2 + $0x20] sm:$0xff]
        %v275 = vld [vmem:[#allocation2 + $0x28] sm:$0xff]
        %v276 = vld [vmem:[#allocation2 + $0x30] sm:$0xff]
        %v277 = vld [vmem:[%s2] sm:$0xff]
        %279 = vset.pattern.permute.xlu0 0
        %280 = vperm.xlu0 %279, %v277
        %v281 = vpop.permute.xlu0 %280
        %vm283 = vcmask 457728
        %v285 = vsel %vm283, %v269, 0
        %287 = vmatprep.subr.mxu0 0.0
        %288 = vmatpush1.msra.mxu0 0.0
        %289 = vmatprep.subr.mxu0 0.0
        %290 = vmatpush1.msra.mxu0 0.0
        %291 = vmatprep.subr.mxu0 0.0
        %292 = vmatpush1.msra.mxu0 0.0
        %293 = vmatprep.subr.mxu0 0.0
        %294 = vmatpush1.msra.mxu0 0.0
        %295 = vmatprep.subr.mxu0 0.0
        %296 = vmatpush1.msra.mxu0 0.0
        %297 = vmatprep.subr.mxu0 0.0
        %298 = vmatpush1.msra.mxu0 0.0
        %299 = vmatprep.subr.mxu0 0.0
        %300 = vmatpush1.msra.mxu0 0.0
        %301 = vmatprep.subr.mxu0 0.0
        %302 = vmatpush1.msra.mxu0 0.0
        %303 = vmatprep.subr.mxu0 0.0
        %304 = vmatpush1.msra.mxu0 0.0
        %305 = vmatprep.subr.mxu0 0.0
        %306 = vmatpush1.msra.mxu0 %v276
        %307 = vmatprep.subr.mxu0 0.0
        %308 = vmatpush1.msra.mxu0 %v275
        %309 = vmatprep.subr.mxu0 0.0
        %310 = vmatpush1.msra.mxu0 %v274
        %311 = vmatprep.subr.mxu0 0.0
        %312 = vmatpush1.msra.mxu0 %v273
        %313 = vmatprep.subr.mxu0 0.0
        %314 = vmatpush1.msra.mxu0 %v272
        %315 = vmatprep.subr.mxu0 0.0
        %316 = vmatpush1.msra.mxu0 %v271
        %317 = vmatprep.subr.mxu0 0.0
        %318 = vmatpush1.msra.mxu0 %v270
        %319 = vmatprep.subr.mxu0 0.0
        %320 = vmatpush2.msra.mxu0 0.0
        %321 = vmatprep.subr.mxu0 0.0
        %322 = vmatpush2.msra.mxu0 0.0
        %323 = vmatprep.subr.mxu0 0.0
        %324 = vmatpush2.msra.mxu0 0.0
        %325 = vmatprep.subr.mxu0 0.0
        %326 = vmatpush2.msra.mxu0 0.0
        %327 = vmatprep.subr.mxu0 0.0
        %328 = vmatpush2.msra.mxu0 0.0
        %329 = vmatprep.subr.mxu0 0.0
        %330 = vmatpush2.msra.mxu0 0.0
        %331 = vmatprep.subr.mxu0 0.0
        %332 = vmatpush2.msra.mxu0 0.0
        %333 = vmatprep.subr.mxu0 0.0
        %334 = vmatpush2.msra.mxu0 0.0
        %335 = vmatprep.subr.mxu0 0.0
        %336 = vmatpush2.msra.mxu0 0.0
        %337 = vmatprep.subr.mxu0 0.0
        %338 = vmatpush2.msra.mxu0 0.0
        %339 = vmatprep.subr.mxu0 0.0
        %340 = vmatpush2.msra.mxu0 0.0
        %341 = vmatprep.subr.mxu0 0.0
        %342 = vmatpush2.msra.mxu0 0.0
        %343 = vmatprep.subr.mxu0 0.0
        %344 = vmatpush2.msra.mxu0 0.0
        %345 = vmatprep.subr.mxu0 0.0
        %346 = vmatpush2.msra.mxu0 0.0
        %347 = vmatprep.subr.mxu0 0.0
        %348 = vmatpush2.msra.mxu0 0.0
        %349 = vmatprep.subr.mxu0 0.0
        %350 = vmatpush2.msra.mxu0 0.0
        %351 = vmatprep.mubr.f32.mxu0 0.0
        %352 = vmatmul.mubr.f32.gmra.mxu0 %v285
        %v353 = vpop.f32.mrf.mxu0
        %v354 = vadd.f32 %v281, %v353
        %v355 = vpop.f32.mrf.mxu0
        %356 = vdwg.mxu0
        %357 = vst [vmem:[%s205] sm:$0xff] %v354
        %v358 = vlaneseq
        %v359 = vand.u32 %v358, 127
        %vm360 = vcmp.lt.s32.totalorder %v359, 16
        %v361 = vsel %vm360, %v354, 0.0
        %362 = vadd.xlane.f32.xlu0 %v361
        %v363 = vpop.xlane.xlu0 %362
        %v364 = vmul.f32 %v363, 0.0625
        %v365 = vsub.f32 %v354, %v364
        %v366 = vsel %vm360, %v365, 0.0
        %v367 = vmul.f32 %v366, %v366
        %368 = vadd.xlane.f32.xlu0 %v367
        %v369 = vpop.xlane.xlu0 %368
        %vm370 = vcmp.eq.s32.totalorder %v359, 0
        %vm371 = vcmp.eq.s32.totalorder %v359, 1
        %v372 = vsel %vm371, %v369, 0.0
        %v373 = vsel %vm370, %v364, %v372
        %374 = vst [vmem:[%s212] sm:$0xff] %v373
        %s375 = sand.u32 %s99, 1
        %s376 = scalar_lea.sflag [#allocation5], %s375
        %s377 = sand.u32 %s99, 1
        %s378 = smul.addr %s377, 8
        %s379 = scalar_lea.vmem [#allocation6], %s378
        %s380 = sand.u32 %s125, 1
        %s381 = scalar_lea.sflag [#allocation8], %s380
        %s382 = sand.u32 %s125, 1
        %s383 = smul.addr %s382, 8
        %s384 = scalar_lea.vmem [#allocation7], %s383
        // Predicated region
        $region37: #{tpu_custom_call.1} parent=31 // pred_check
          %p385 = pneg %p109
        $region38: #{tpu_custom_call.1} parent=31 // pred_check_branch
          %387 = sbr.rel (%p385) target = $region40
        $region39: #{tpu_custom_call.1} parent=31 // pred_region
          %s389 = ssub.s32 128, 128
          %390 = vsyncadd %s376, %s389
          %s391 = smul.addr %s23, 128
          %s392 = scalar_lea.hbm %s3, %s391
          %s394 = sshll.u32 %s379, 4
          %s395 = int_to_ptr.vmem [resolvable:$true] %s394
          %397 = dma.vmem_to_hbm [thread:$0]  %s395, 128, %s392, %s376
        $region40: #{tpu_custom_call.1} parent=31 // pred_fallthru
          _
        // Predicated region
        $region41: #{tpu_custom_call.1} parent=31 // pred_check
          %p398 = pneg %p135
        $region42: #{tpu_custom_call.1} parent=31 // pred_check_branch
          %400 = sbr.rel (%p398) target = $region44
        $region43: #{tpu_custom_call.1} parent=31 // pred_region
          %s402 = ssub.s32 128, 128
          %403 = vsyncadd %s381, %s402
          %s404 = smul.addr %s23, 128
          %s405 = scalar_lea.hbm %s4, %s404
          %s407 = sshll.u32 %s384, 4
          %s408 = int_to_ptr.vmem [resolvable:$true] %s407
          %410 = dma.vmem_to_hbm [thread:$0]  %s408, 128, %s405, %s381
        $region44: #{tpu_custom_call.1} parent=31 // pred_fallthru
          _
      $region32: #{tpu_custom_call.1} parent=5 // pred_fallthru
        _
      %p411 = scmp.le.s32.totalorder 2, %s18
      // Predicated region
      $region45: #{tpu_custom_call.1} parent=5 // pred_check
        %p412 = pneg %p411
      $region46: #{tpu_custom_call.1} parent=5 // pred_check_branch
        %414 = sbr.rel (%p412) target = $region48
      $region47: #{tpu_custom_call.1} parent=5 // pred_region
        %s415 = ssub.s32 %s18, 2
        // Predicated region
        $region49: #{tpu_custom_call.1} parent=47 // pred_check
          %p416 = pneg %p115
        $region50: #{tpu_custom_call.1} parent=47 // pred_check_branch
          %418 = sbr.rel (%p416) target = $region52
        $region51: #{tpu_custom_call.1} parent=47 // pred_region
          %s419 = sand.u32 %s100, 1
          %s420 = scalar_lea.sflag [#allocation5], %s419
          %s421 = sand.u32 %s100, 1
          %s422 = smul.addr %s421, 8
          %s423 = scalar_lea.vmem [#allocation6], %s422
          %424 = dma.done %s420, 128
        $region52: #{tpu_custom_call.1} parent=47 // pred_fallthru
          _
        // Predicated region
        $region53: #{tpu_custom_call.1} parent=47 // pred_check
          %p425 = pneg %p141
        $region54: #{tpu_custom_call.1} parent=47 // pred_check_branch
          %427 = sbr.rel (%p425) target = $region56
        $region55: #{tpu_custom_call.1} parent=47 // pred_region
          %s428 = sand.u32 %s126, 1
          %s429 = scalar_lea.sflag [#allocation8], %s428
          %s430 = sand.u32 %s126, 1
          %s431 = smul.addr %s430, 8
          %s432 = scalar_lea.vmem [#allocation7], %s431
          %433 = dma.done %s429, 128
        $region56: #{tpu_custom_call.1} parent=47 // pred_fallthru
          _
      $region48: #{tpu_custom_call.1} parent=5 // pred_fallthru
        _
    $region6: #{tpu_custom_call.1} parent=1 // loop_footer
      %s22 = sadd.s32 1, %s18
    $region7: #{tpu_custom_call.1} parent=1 // loop_footer_branch
      %17 = sbr.rel target = $region3
    $region8: #{tpu_custom_call.1} parent=1 // loop_exit
      _
    %434 = vsyncpa [#allocation4], 1
    %s435 = scalar_lea.sflag [#allocation4], 1
    %436 = vsyncpa %s435, 1
    %437 = vsyncpa [#allocation5], 1
    %s438 = scalar_lea.sflag [#allocation5], 1
    %439 = vsyncpa %s438, 1
    %440 = vsyncpa [#allocation8], 1
    %s441 = scalar_lea.sflag [#allocation8], 1
    %442 = vsyncpa %s441, 1

</llo_original>
